<compile_context>
chip_gen: v7x
topology: tpu7x:2x2x1
jax: 0.10.0
libtpu: 0.0.40
codegen_flags: <defaults>
</compile_context>

<pallas_src>
import math

import jax
import jax.numpy as jnp
from jax.experimental import pallas as pl
from jax.experimental.pallas import tpu as pltpu

IN_DIM = 2
HIDDEN = 60
MID = 30
OUT_DIM = 2

# nn.Sequential layer dims, PyTorch convention (out_features, in_features).
LAYER_DIMS = [
    (HIDDEN, IN_DIM),
    (HIDDEN, HIDDEN),
    (HIDDEN, HIDDEN),
    (HIDDEN, HIDDEN),
    (HIDDEN, HIDDEN),
    (MID, HIDDEN),
    (OUT_DIM, MID),
]
N_LAYERS = len(LAYER_DIMS)

# Padded slab layout: each layer's rows (out_features) are padded to a multiple
# of 8 sublanes; the lane (in_features) axis is padded to F_PAD, so every MXU
# dot is a uniform [OUT_PAD_i, F_PAD] x [F_PAD, tile_n].  Zero padding is exact
# because tanh(0) == 0 and 0 * x == 0, so padded rows/cols stay identically 0.
F_PAD = 64                                # padded feature width (covers 60, 30)
OUT_PAD = [64, 64, 64, 64, 64, 64, 8]     # padded out_features per layer
ROFF = []
_off = 0
for _p in OUT_PAD:
    ROFF.append(_off)
    _off += _p
SLAB_ROWS = _off                          # 392 (multiple of 8)


def _round_up(n, m):
    return ((n + m - 1) // m) * m


def mlp_kernel(xt_ref, w_ref, b_ref, out_ref):
    """Fused 7-layer MLP.

    xt_ref : [2, tile_n]        (row 0 = x, row 1 = t; batch on lanes)
    w_ref  : [SLAB_ROWS, F_PAD] packed weights, PyTorch [out, in] layout per block
    b_ref  : [SLAB_ROWS, 1]     packed biases (column vectors)
    out_ref: [2, tile_n]        (row 0 = real, row 1 = imag)
    """
    x_row = xt_ref[0:1, :]                          # [1, tile_n]
    t_row = xt_ref[1:2, :]                          # [1, tile_n]

    # Layer 1 (in = 2): two broadcast FMAs on the VPU instead of a K=2 MXU pass.
    w1 = w_ref[pl.ds(ROFF[0], OUT_PAD[0]), :]       # [64, 64]; only lanes 0,1 used
    b1 = b_ref[pl.ds(ROFF[0], OUT_PAD[0]), :]       # [64, 1]
    h = jnp.tanh(w1[:, 0:1] * x_row + w1[:, 1:2] * t_row + b1)   # [64, tile_n]

    # Layers 2..6: MXU matmul + bias + tanh (f32 accumulation).
    for i in range(1, N_LAYERS - 1):
        w = w_ref[pl.ds(ROFF[i], OUT_PAD[i]), :]    # [64, 64]
        b = b_ref[pl.ds(ROFF[i], OUT_PAD[i]), :]    # [64, 1]
        h = jnp.tanh(jnp.dot(w, h, preferred_element_type=jnp.float32) + b)

    # Final linear layer, no activation.
    w7 = w_ref[pl.ds(ROFF[-1], OUT_PAD[-1]), :]     # [8, 64]
    b7 = b_ref[pl.ds(ROFF[-1], OUT_PAD[-1]), :]     # [8, 1]
    out = jnp.dot(w7, h, preferred_element_type=jnp.float32) + b7   # [8, tile_n]

    # Lane-dense store: only the first two rows (real, imag) are meaningful.
    out_ref[...] = out[0:2, :].astype(out_ref.dtype)


def init_params(key):
    """Xavier-uniform weights ([out, in] PyTorch layout), zero biases."""
    params = []
    for (fan_out, fan_in) in LAYER_DIMS:
        key, sub = jax.random.split(key)
        bound = math.sqrt(6.0 / (fan_in + fan_out))
        w = jax.random.uniform(sub, (fan_out, fan_in), minval=-bound,
                               maxval=bound, dtype=jnp.float32)
        b = jnp.zeros((fan_out,), dtype=jnp.float32)
        params.append((w, b))
    return params


def pack_params(params):
    """Pack per-layer (W, b) into two pre-padded, VMEM-resident slabs."""
    w_slab = jnp.zeros((SLAB_ROWS, F_PAD), dtype=jnp.float32)
    b_slab = jnp.zeros((SLAB_ROWS, 1), dtype=jnp.float32)
    for (w, b), roff in zip(params, ROFF):
        out_f, in_f = w.shape
        w_slab = w_slab.at[roff:roff + out_f, :in_f].set(w)
        b_slab = b_slab.at[roff:roff + out_f, 0].set(b)
    return w_slab, b_slab


def complex_network_forward(x, t, w_slab, b_slab, *, tile_n=512):
    """x: [N,1] f32, t: [N,1] f32 -> complex64 [N]."""
    N = x.shape[0]
    # cat([x, t], dim=1) then transpose to feature-major [2, N] (wrapper glue).
    xt_T = jnp.concatenate([x, t], axis=1).T.astype(jnp.float32)

    # Large, lane-aligned batch tile; never larger than the padded batch.
    tile_n = min(int(tile_n), _round_up(max(N, 1), 128))
    tile_n = _round_up(tile_n, 128)
    n_pad = _round_up(N, tile_n)
    if n_pad != N:
        xt_T = jnp.pad(xt_T, ((0, 0), (0, n_pad - N)))
    grid = (n_pad // tile_n,)

    flops_per_row = 2 * (IN_DIM * HIDDEN + 4 * HIDDEN * HIDDEN
                         + HIDDEN * MID + MID * OUT_DIM)
    param_bytes = (w_slab.size + b_slab.size) * 4
    cost = pl.CostEstimate(
        flops=flops_per_row * n_pad,
        transcendentals=(5 * HIDDEN + MID) * n_pad,
        bytes_accessed=n_pad * (IN_DIM + OUT_DIM) * 4 + param_bytes,
    )

    out = pl.pallas_call(
        mlp_kernel,
        out_shape=jax.ShapeDtypeStruct((OUT_DIM, n_pad), jnp.float32),
        grid=grid,
        in_specs=[
            pl.BlockSpec((IN_DIM, tile_n), lambda i: (0, i)),     # activations
            pl.BlockSpec((SLAB_ROWS, F_PAD), lambda i: (0, 0)),   # weight slab (resident)
            pl.BlockSpec((SLAB_ROWS, 1), lambda i: (0, 0)),       # bias slab (resident)
        ],
        out_specs=pl.BlockSpec((OUT_DIM, tile_n), lambda i: (0, i)),
        compiler_params=pltpu.CompilerParams(
            dimension_semantics=("parallel",),   # batch tiles shard across TCs on v7x
        ),
        cost_estimate=cost,
    )(xt_T, w_slab, b_slab)

    # unbind(-1) + torch.complex equivalent: rows already hold re / im.
    re = out[0, :N]
    im = out[1, :N]
    return jax.lax.complex(re, im)


if __name__ == "__main__":
    key = jax.random.PRNGKey(0)
    pkey, xkey, tkey = jax.random.split(key, 3)

    params = init_params(pkey)
    w_slab, b_slab = pack_params(params)

    # Small demo batch; deliberately not a multiple of the tile (exercises the
    # padding path) and spanning several grid steps (exercises multi-tile).
    N = 300
    x = jax.random.normal(xkey, (N, 1), dtype=jnp.float32)
    t = jax.random.normal(tkey, (N, 1), dtype=jnp.float32)

    out = complex_network_forward(x, t, w_slab, b_slab, tile_n=128)
    out = jax.block_until_ready(out)

    assert out.shape == (N,)
    assert out.dtype == jnp.complex64

    # Pure-JAX reference of the same math (PyTorch layout: h @ W.T + b).
    def ref(x, t, params):
        h = jnp.concatenate([x, t], axis=1)
        for i, (w, b) in enumerate(params):
            h = h @ w.T + b
            if i < len(params) - 1:
                h = jnp.tanh(h)
        return jax.lax.complex(h[:, 0], h[:, 1])

    ref_out = ref(x, t, params)
    max_err = float(jnp.max(jnp.abs(out - ref_out)))
    assert jnp.allclose(out, ref_out, atol=1e-5, rtol=1e-4), max_err

    print("KERNEL_OK")
</pallas_src>

<mosaic_0001>
module attributes {stable_mosaic.version = 11 : i64} {
  func.func @mlp_kernel(%arg0: i32, %arg1: memref<2x128xf32, #tpu.memory_space<vmem>>, %arg2: memref<392x64xf32, #tpu.memory_space<vmem>>, %arg3: memref<392x1xf32, #tpu.memory_space<vmem>>, %arg4: memref<2x128xf32, #tpu.memory_space<vmem>>) attributes {dimension_semantics = [#tpu.dimension_semantics<parallel>], iteration_bounds = array<i64: 3>, scalar_prefetch = 0 : i64, scratch_operands = 0 : i64, tpu.core_type = #tpu.core_type<tc>, window_params = [{transform_indices = @transform_0, window_bounds = array<i64: 2, 128>}, {pipeline_mode = #tpu.pipeline_mode<synchronous>, transform_indices = @transform_1, window_bounds = array<i64: 392, 64>}, {pipeline_mode = #tpu.pipeline_mode<synchronous>, transform_indices = @transform_2, window_bounds = array<i64: 392, 1>}, {transform_indices = @transform_3, window_bounds = array<i64: 2, 128>}]} {
    %c0 = arith.constant 0 : index
    %c0_0 = arith.constant 0 : index
    %0 = vector.load %arg1[%c0, %c0_0] : memref<2x128xf32, #tpu.memory_space<vmem>>, vector<1x128xf32>
    %c1 = arith.constant 1 : index
    %c0_1 = arith.constant 0 : index
    %1 = vector.load %arg1[%c1, %c0_1] : memref<2x128xf32, #tpu.memory_space<vmem>>, vector<1x128xf32>
    %c0_2 = arith.constant 0 : index
    %c0_3 = arith.constant 0 : index
    %2 = vector.load %arg2[%c0_2, %c0_3] : memref<392x64xf32, #tpu.memory_space<vmem>>, vector<64x64xf32>
    %c0_4 = arith.constant 0 : index
    %c0_5 = arith.constant 0 : index
    %3 = vector.load %arg3[%c0_4, %c0_5] : memref<392x1xf32, #tpu.memory_space<vmem>>, vector<64x1xf32>
    %4 = vector.extract_strided_slice %2 {offsets = [0, 0], sizes = [64, 1], strides = [1, 1]} : vector<64x64xf32> to vector<64x1xf32>
    %5 = vector.broadcast %4 : vector<64x1xf32> to vector<64x128xf32>
    %6 = vector.broadcast %0 : vector<1x128xf32> to vector<64x128xf32>
    %7 = arith.mulf %5, %6 : vector<64x128xf32>
    %8 = vector.extract_strided_slice %2 {offsets = [0, 1], sizes = [64, 1], strides = [1, 1]} : vector<64x64xf32> to vector<64x1xf32>
    %9 = vector.broadcast %8 : vector<64x1xf32> to vector<64x128xf32>
    %10 = vector.broadcast %1 : vector<1x128xf32> to vector<64x128xf32>
    %11 = arith.mulf %9, %10 : vector<64x128xf32>
    %12 = arith.addf %7, %11 : vector<64x128xf32>
    %13 = vector.broadcast %3 : vector<64x1xf32> to vector<64x128xf32>
    %14 = arith.addf %12, %13 : vector<64x128xf32>
    %15 = math.tanh %14 : vector<64x128xf32>
    %c64 = arith.constant 64 : index
    %c0_6 = arith.constant 0 : index
    %16 = vector.load %arg2[%c64, %c0_6] : memref<392x64xf32, #tpu.memory_space<vmem>>, vector<64x64xf32>
    %c64_7 = arith.constant 64 : index
    %c0_8 = arith.constant 0 : index
    %17 = vector.load %arg3[%c64_7, %c0_8] : memref<392x1xf32, #tpu.memory_space<vmem>>, vector<64x1xf32>
    %cst = arith.constant dense<0.000000e+00> : vector<64x128xf32>
    %18 = tpu.matmul %16, %15, %cst {dimension_numbers = #tpu.dot_dimension_numbers<[1], [0], [0], [1], [0, 0, 1, 1], [], []>} : vector<64x64xf32>, vector<64x128xf32>, vector<64x128xf32> -> vector<64x128xf32>
    %19 = vector.broadcast %17 : vector<64x1xf32> to vector<64x128xf32>
    %20 = arith.addf %18, %19 : vector<64x128xf32>
    %21 = math.tanh %20 : vector<64x128xf32>
    %c128 = arith.constant 128 : index
    %c0_9 = arith.constant 0 : index
    %22 = vector.load %arg2[%c128, %c0_9] : memref<392x64xf32, #tpu.memory_space<vmem>>, vector<64x64xf32>
    %c128_10 = arith.constant 128 : index
    %c0_11 = arith.constant 0 : index
    %23 = vector.load %arg3[%c128_10, %c0_11] : memref<392x1xf32, #tpu.memory_space<vmem>>, vector<64x1xf32>
    %cst_12 = arith.constant dense<0.000000e+00> : vector<64x128xf32>
    %24 = tpu.matmul %22, %21, %cst_12 {dimension_numbers = #tpu.dot_dimension_numbers<[1], [0], [0], [1], [0, 0, 1, 1], [], []>} : vector<64x64xf32>, vector<64x128xf32>, vector<64x128xf32> -> vector<64x128xf32>
    %25 = vector.broadcast %23 : vector<64x1xf32> to vector<64x128xf32>
    %26 = arith.addf %24, %25 : vector<64x128xf32>
    %27 = math.tanh %26 : vector<64x128xf32>
    %c192 = arith.constant 192 : index
    %c0_13 = arith.constant 0 : index
    %28 = vector.load %arg2[%c192, %c0_13] : memref<392x64xf32, #tpu.memory_space<vmem>>, vector<64x64xf32>
    %c192_14 = arith.constant 192 : index
    %c0_15 = arith.constant 0 : index
    %29 = vector.load %arg3[%c192_14, %c0_15] : memref<392x1xf32, #tpu.memory_space<vmem>>, vector<64x1xf32>
    %cst_16 = arith.constant dense<0.000000e+00> : vector<64x128xf32>
    %30 = tpu.matmul %28, %27, %cst_16 {dimension_numbers = #tpu.dot_dimension_numbers<[1], [0], [0], [1], [0, 0, 1, 1], [], []>} : vector<64x64xf32>, vector<64x128xf32>, vector<64x128xf32> -> vector<64x128xf32>
    %31 = vector.broadcast %29 : vector<64x1xf32> to vector<64x128xf32>
    %32 = arith.addf %30, %31 : vector<64x128xf32>
    %33 = math.tanh %32 : vector<64x128xf32>
    %c256 = arith.constant 256 : index
    %c0_17 = arith.constant 0 : index
    %34 = vector.load %arg2[%c256, %c0_17] : memref<392x64xf32, #tpu.memory_space<vmem>>, vector<64x64xf32>
    %c256_18 = arith.constant 256 : index
    %c0_19 = arith.constant 0 : index
    %35 = vector.load %arg3[%c256_18, %c0_19] : memref<392x1xf32, #tpu.memory_space<vmem>>, vector<64x1xf32>
    %cst_20 = arith.constant dense<0.000000e+00> : vector<64x128xf32>
    %36 = tpu.matmul %34, %33, %cst_20 {dimension_numbers = #tpu.dot_dimension_numbers<[1], [0], [0], [1], [0, 0, 1, 1], [], []>} : vector<64x64xf32>, vector<64x128xf32>, vector<64x128xf32> -> vector<64x128xf32>
    %37 = vector.broadcast %35 : vector<64x1xf32> to vector<64x128xf32>
    %38 = arith.addf %36, %37 : vector<64x128xf32>
    %39 = math.tanh %38 : vector<64x128xf32>
    %c320 = arith.constant 320 : index
    %c0_21 = arith.constant 0 : index
    %40 = vector.load %arg2[%c320, %c0_21] : memref<392x64xf32, #tpu.memory_space<vmem>>, vector<64x64xf32>
    %c320_22 = arith.constant 320 : index
    %c0_23 = arith.constant 0 : index
    %41 = vector.load %arg3[%c320_22, %c0_23] : memref<392x1xf32, #tpu.memory_space<vmem>>, vector<64x1xf32>
    %cst_24 = arith.constant dense<0.000000e+00> : vector<64x128xf32>
    %42 = tpu.matmul %40, %39, %cst_24 {dimension_numbers = #tpu.dot_dimension_numbers<[1], [0], [0], [1], [0, 0, 1, 1], [], []>} : vector<64x64xf32>, vector<64x128xf32>, vector<64x128xf32> -> vector<64x128xf32>
    %43 = vector.broadcast %41 : vector<64x1xf32> to vector<64x128xf32>
    %44 = arith.addf %42, %43 : vector<64x128xf32>
    %45 = math.tanh %44 : vector<64x128xf32>
    %c384 = arith.constant 384 : index
    %c0_25 = arith.constant 0 : index
    %46 = vector.load %arg2[%c384, %c0_25] : memref<392x64xf32, #tpu.memory_space<vmem>>, vector<8x64xf32>
    %c384_26 = arith.constant 384 : index
    %c0_27 = arith.constant 0 : index
    %47 = vector.load %arg3[%c384_26, %c0_27] : memref<392x1xf32, #tpu.memory_space<vmem>>, vector<8x1xf32>
    %cst_28 = arith.constant dense<0.000000e+00> : vector<8x128xf32>
    %48 = tpu.matmul %46, %45, %cst_28 {dimension_numbers = #tpu.dot_dimension_numbers<[1], [0], [0], [1], [0, 0, 1, 1], [], []>} : vector<8x64xf32>, vector<64x128xf32>, vector<8x128xf32> -> vector<8x128xf32>
    %49 = vector.broadcast %47 : vector<8x1xf32> to vector<8x128xf32>
    %50 = arith.addf %48, %49 : vector<8x128xf32>
    %51 = vector.extract_strided_slice %50 {offsets = [0, 0], sizes = [2, 128], strides = [1, 1]} : vector<8x128xf32> to vector<2x128xf32>
    %c0_29 = arith.constant 0 : index
    %c0_30 = arith.constant 0 : index
    %52 = vector.load %arg4[%c0_29, %c0_30] : memref<2x128xf32, #tpu.memory_space<vmem>>, vector<2x128xf32>
    tpu.vector_store %arg4[%c0_29, %c0_30], %51 {strides = array<i32>} : memref<2x128xf32, #tpu.memory_space<vmem>>, vector<2x128xf32>,
    return
  }
  func.func @transform_0(%arg0: i32) -> (i32, i32) {
    %c0_i32 = arith.constant 0 : i32
    %c0_i32_0 = arith.constant 0 : i32
    return %c0_i32, %arg0 : i32, i32
  }
  func.func @transform_1(%arg0: i32) -> (i32, i32) {
    %c0_i32 = arith.constant 0 : i32
    %c0_i32_0 = arith.constant 0 : i32
    %c0_i32_1 = arith.constant 0 : i32
    return %c0_i32, %c0_i32_0 : i32, i32
  }
  func.func @transform_2(%arg0: i32) -> (i32, i32) {
    %c0_i32 = arith.constant 0 : i32
    %c0_i32_0 = arith.constant 0 : i32
    %c0_i32_1 = arith.constant 0 : i32
    return %c0_i32, %c0_i32_0 : i32, i32
  }
  func.func @transform_3(%arg0: i32) -> (i32, i32) {
    %c0_i32 = arith.constant 0 : i32
    %c0_i32_0 = arith.constant 0 : i32
    return %c0_i32, %arg0 : i32, i32
  }
}

</mosaic_0001>

<llo_original>
// kernel: tpu_custom_call.1
$region0: #{tpu_custom_call.1}
  #allocation0 [shape = 'u32[]', space=smem, size = 0x4, offset = 0x4, fixed_abs, tag = 'smem constant byte address 0x4 - core index']
  #allocation1 [shape = 'u32[144,128]{1,0:T(1,128)}', space=vmem, size = 0x12000, scoped, tag = 'internal scratch']
  %s0 = inlined_call_operand.vmem [shape: f32[2,384], index: 0, kind: input, shape index: {}]
  %s1 = inlined_call_operand.vmem [shape: f32[392,64], index: 1, kind: input, shape index: {}]
  %s2 = inlined_call_operand.vmem [shape: f32[392,1], index: 2, kind: input, shape index: {}]
  %s3 = inlined_call_operand.hbm [shape: f32[2,384], index: 3, kind: output, shape index: {}]
  %s4 = sld [smem:[#allocation0]]
  $region45: #{tpu_custom_call.1} parent=0
    _
  %s6 = ssub.s32 1, %s4
  %s7 = scalar_select 0, %s6, %s4
  $region1: #{tpu_custom_call.1} parent=0
    #allocation2 [shape = 'u8[2048]{0}', space=vmem, size = 0x800, scoped, tag = 'output window, operand 0']
    #allocation3 [shape = 's32[2]{0}', space=sflag, size = 0x8, scoped, tag = 'scoped memory for tpu_custom_call.1']
    %8 = vsyncpa [#allocation3], 0
    %s9 = scalar_lea.sflag [#allocation3], 1
    %10 = vsyncpa %s9, 0
    loop: start=0, step=1, limit=5
    $region2: #{tpu_custom_call.1} parent=1 // loop_pre_header
      _
    $region3: #{tpu_custom_call.1} parent=1 // loop_header
      %s12 = sphi 0, %s16
      %p13 = scmp.ge.s32.totalorder %s12, 5
      %s22 = sphi 0, %s24
      %s25 = sphi 0, %s22
      %s26 = sphi 0, %s25
      %s42 = sphi 0, %s26
      %s46 = sphi 0, %s46
      %s48 = sphi 0, %s46
      %s49 = sphi 0, %s48
      %s63 = sphi 0, %s49
      %s67 = sphi 0, %s67
      %s69 = sphi 0, %s67
      %s70 = sphi 0, %s69
      %s84 = sphi 0, %s70
      %s90 = sphi 0, %s92
      %s93 = sphi 0, %s90
      %s94 = sphi 0, %s93
      %s110 = sphi 0, %s94
    $region4: #{tpu_custom_call.1} parent=1 // loop_header_branch
      %15 = sbr.rel (%p13) target = $region8
    $region5: #{tpu_custom_call.1} parent=1 // loop_body
      %s17 = ssub.s32 %s12, 1
      %s18 = ssub.s32 %s12, 2
      %s19 = sadd.s32 %s12, 1
      %s20 = ssub.s32 %s12, %s19
      %p21 = scmp.eq.s32.totalorder %s20, 0
      %s23 = sadd.s32 %s22, 1
      %s24 = scalar_select %p21, %s22, %s23
      %p27 = pneg %p21
      %p28 = scmp.eq.s32.totalorder %s12, 2
      %p29 = por %p27, %p28
      %p30 = scmp.ne.s32.totalorder %s22, %s25
      %p31 = scmp.eq.s32.totalorder %s12, 0
      %p32 = por %p30, %p31
      %p33 = scmp.ne.s32.totalorder %s22, %s25
      %p34 = scmp.eq.s32.totalorder %s17, 2
      %p35 = por %p33, %p34
      %p36 = scmp.ne.s32.totalorder %s25, %s26
      %p37 = scmp.eq.s32.totalorder %s17, 0
      %p38 = por %p36, %p37
      %p39 = scmp.ne.s32.totalorder %s25, %s26
      %p40 = scmp.eq.s32.totalorder %s18, 2
      %p41 = por %p39, %p40
      %p43 = scmp.ne.s32.totalorder %s26, %s42
      %p44 = scmp.eq.s32.totalorder %s18, 0
      %p45 = por %p43, %p44
      %s47 = sadd.s32 %s46, 1
      %p50 = scmp.eq.s32.totalorder %s12, 2
      %p51 = scmp.ne.s32.totalorder %s46, %s48
      %p52 = scmp.eq.s32.totalorder %s12, 0
      %p53 = por %p51, %p52
      %p54 = scmp.ne.s32.totalorder %s46, %s48
      %p55 = scmp.eq.s32.totalorder %s17, 2
      %p56 = por %p54, %p55
      %p57 = scmp.ne.s32.totalorder %s48, %s49
      %p58 = scmp.eq.s32.totalorder %s17, 0
      %p59 = por %p57, %p58
      %p60 = scmp.ne.s32.totalorder %s48, %s49
      %p61 = scmp.eq.s32.totalorder %s18, 2
      %p62 = por %p60, %p61
      %p64 = scmp.ne.s32.totalorder %s49, %s63
      %p65 = scmp.eq.s32.totalorder %s18, 0
      %p66 = por %p64, %p65
      %s68 = sadd.s32 %s67, 1
      %p71 = scmp.eq.s32.totalorder %s12, 2
      %p72 = scmp.ne.s32.totalorder %s67, %s69
      %p73 = scmp.eq.s32.totalorder %s12, 0
      %p74 = por %p72, %p73
      %p75 = scmp.ne.s32.totalorder %s67, %s69
      %p76 = scmp.eq.s32.totalorder %s17, 2
      %p77 = por %p75, %p76
      %p78 = scmp.ne.s32.totalorder %s69, %s70
      %p79 = scmp.eq.s32.totalorder %s17, 0
      %p80 = por %p78, %p79
      %p81 = scmp.ne.s32.totalorder %s69, %s70
      %p82 = scmp.eq.s32.totalorder %s18, 2
      %p83 = por %p81, %p82
      %p85 = scmp.ne.s32.totalorder %s70, %s84
      %p86 = scmp.eq.s32.totalorder %s18, 0
      %p87 = por %p85, %p86
      %s88 = ssub.s32 %s12, %s19
      %p89 = scmp.eq.s32.totalorder %s88, 0
      %s91 = sadd.s32 %s90, 1
      %s92 = scalar_select %p89, %s90, %s91
      %p95 = pneg %p89
      %p96 = scmp.eq.s32.totalorder %s12, 2
      %p97 = por %p95, %p96
      %p98 = scmp.ne.s32.totalorder %s90, %s93
      %p99 = scmp.eq.s32.totalorder %s12, 0
      %p100 = por %p98, %p99
      %p101 = scmp.ne.s32.totalorder %s90, %s93
      %p102 = scmp.eq.s32.totalorder %s17, 2
      %p103 = por %p101, %p102
      %p104 = scmp.ne.s32.totalorder %s93, %s94
      %p105 = scmp.eq.s32.totalorder %s17, 0
      %p106 = por %p104, %p105
      %p107 = scmp.ne.s32.totalorder %s93, %s94
      %p108 = scmp.eq.s32.totalorder %s18, 2
      %p109 = por %p107, %p108
      %p111 = scmp.ne.s32.totalorder %s94, %s110
      %p112 = scmp.eq.s32.totalorder %s18, 0
      %p113 = por %p111, %p112
      %p114 = scmp.le.s32.totalorder 1, %s12
      %p115 = scmp.lt.s32.totalorder %s12, 4
      %p116 = pnand %p114, %p115
      %p117 = pneg %p116
      // Predicated region
      $region9: #{tpu_custom_call.1} parent=5 // pred_check
        _
      $region10: #{tpu_custom_call.1} parent=5 // pred_check_branch
        %119 = sbr.rel (%p116) target = $region12
      $region11: #{tpu_custom_call.1} parent=5 // pred_region
        %s120 = ssub.s32 %s12, 1
        // Predicated region
        $region13: #{tpu_custom_call.1} parent=11 // pred_check
          %p121 = pneg %p59
        $region14: #{tpu_custom_call.1} parent=11 // pred_check_branch
          %123 = sbr.rel (%p121) target = $region16
        $region15: #{tpu_custom_call.1} parent=11 // pred_region
          _
        $region16: #{tpu_custom_call.1} parent=11 // pred_fallthru
          _
        // Predicated region
        $region17: #{tpu_custom_call.1} parent=11 // pred_check
          %p124 = pneg %p80
        $region18: #{tpu_custom_call.1} parent=11 // pred_check_branch
          %126 = sbr.rel (%p124) target = $region20
        $region19: #{tpu_custom_call.1} parent=11 // pred_region
          _
        $region20: #{tpu_custom_call.1} parent=11 // pred_fallthru
          _
      $region12: #{tpu_custom_call.1} parent=5 // pred_fallthru
        _
      %p127 = scmp.lt.s32.totalorder %s12, 3
      // Predicated region
      $region21: #{tpu_custom_call.1} parent=5 // pred_check
        %p128 = pneg %p127
      $region22: #{tpu_custom_call.1} parent=5 // pred_check_branch
        %130 = sbr.rel (%p128) target = $region24
      $region23: #{tpu_custom_call.1} parent=5 // pred_region
        // Predicated region
        $region25: #{tpu_custom_call.1} parent=23 // pred_check
          %p131 = pneg %p32
        $region26: #{tpu_custom_call.1} parent=23 // pred_check_branch
          %133 = sbr.rel (%p131) target = $region28
        $region27: #{tpu_custom_call.1} parent=23 // pred_region
          %p134 = scmp.lt.s32.totalorder %s12, 2
          %s135 = scalar_select %p134, %s12, 2
          %s136 = smul.addr %s135, 2
          %s137 = scalar_lea.vmem %s0, %s136
        $region28: #{tpu_custom_call.1} parent=23 // pred_fallthru
          _
      $region24: #{tpu_custom_call.1} parent=5 // pred_fallthru
        _
      %p138 = scmp.le.s32.totalorder 1, %s12
      %p139 = scmp.lt.s32.totalorder %s12, 4
      %p140 = pnand %p138, %p139
      %p141 = pneg %p140
      // Predicated region
      $region29: #{tpu_custom_call.1} parent=5 // pred_check
        _
      $region30: #{tpu_custom_call.1} parent=5 // pred_check_branch
        %143 = sbr.rel (%p140) target = $region32
      $region31: #{tpu_custom_call.1} parent=5 // pred_region
        %s144 = ssub.s32 %s12, 1
        %p145 = scmp.lt.s32.totalorder %s17, 2
        %s146 = scalar_select %p145, %s17, 2
        %s147 = smul.addr %s146, 2
        %s148 = scalar_lea.vmem %s0, %s147
        %p149 = pneg %p38
        %p150 = pneg %p35
        %p151 = pneg %p59
        %p152 = pneg %p56
        %p153 = pneg %p80
        %p154 = pneg %p77
        %p155 = pneg %p106
        %p156 = pneg %p103
        %s157 = sand.u32 %s93, 1
        %s158 = scalar_lea.sflag [#allocation3], %s157
        %s159 = sand.u32 %s93, 1
        %s160 = smul.addr %s159, 2
        %s161 = scalar_lea.vmem [#allocation2], %s160
        %p162 = scmp.lt.s32.totalorder %s17, 2
        %s163 = scalar_select %p162, %s17, 2
        %s164 = smul.addr %s163, 2
        %s165 = scalar_lea.vmem %s0, %s164
        %v166 = vld [vmem:[%s165] sm:$0x1]
        %v167 = vld [vmem:[%s165 + $0x1] sm:$0x1]
        %v168 = vld [vmem:[%s1] sm:$0xff]
        %v169 = vld [vmem:[%s1 + $0x8] sm:$0xff]
        %v170 = vld [vmem:[%s1 + $0x10] sm:$0xff]
        %v171 = vld [vmem:[%s1 + $0x18] sm:$0xff]
        %v172 = vld [vmem:[%s1 + $0x20] sm:$0xff]
        %v173 = vld [vmem:[%s1 + $0x28] sm:$0xff]
        %v174 = vld [vmem:[%s1 + $0x30] sm:$0xff]
        %v175 = vld [vmem:[%s1 + $0x38] sm:$0xff]
        %v176 = vld [vmem:[%s2] sm:$0xff]
        %v177 = vld [vmem:[%s2 + $0x8] sm:$0xff]
        %v178 = vld [vmem:[%s2 + $0x10] sm:$0xff]
        %v179 = vld [vmem:[%s2 + $0x18] sm:$0xff]
        %v180 = vld [vmem:[%s2 + $0x20] sm:$0xff]
        %v181 = vld [vmem:[%s2 + $0x28] sm:$0xff]
        %v182 = vld [vmem:[%s2 + $0x30] sm:$0xff]
        %v183 = vld [vmem:[%s2 + $0x38] sm:$0xff]
        %185 = vset.pattern.permute.xlu0 0
        %186 = vperm.xlu0 %185, %v168
        %v187 = vpop.permute.xlu0 %186
        %190 = vset.pattern.permute.xlu0 0
        %191 = vperm.xlu0 %190, %v169
        %v192 = vpop.permute.xlu0 %191
        %195 = vset.pattern.permute.xlu0 0
        %196 = vperm.xlu0 %195, %v170
        %v197 = vpop.permute.xlu0 %196
        %200 = vset.pattern.permute.xlu0 0
        %201 = vperm.xlu0 %200, %v171
        %v202 = vpop.permute.xlu0 %201
        %205 = vset.pattern.permute.xlu0 0
        %206 = vperm.xlu0 %205, %v172
        %v207 = vpop.permute.xlu0 %206
        %210 = vset.pattern.permute.xlu0 0
        %211 = vperm.xlu0 %210, %v173
        %v212 = vpop.permute.xlu0 %211
        %215 = vset.pattern.permute.xlu0 0
        %216 = vperm.xlu0 %215, %v174
        %v217 = vpop.permute.xlu0 %216
        %220 = vset.pattern.permute.xlu0 0
        %221 = vperm.xlu0 %220, %v175
        %v222 = vpop.permute.xlu0 %221
        %v224 = vlaneseq
        %v225 = vshrl.u32 %v224, 7
        %v226 = vsub.s32 0, %v225
        %v227 = vrot.slane %v166, %v226
        %v228 = vmul.f32 %v187, %v227
        %v229 = vmul.f32 %v192, %v227
        %v230 = vmul.f32 %v197, %v227
        %v231 = vmul.f32 %v202, %v227
        %v232 = vmul.f32 %v207, %v227
        %v233 = vmul.f32 %v212, %v227
        %v234 = vmul.f32 %v217, %v227
        %v235 = vmul.f32 %v222, %v227
        %236 = vset.pattern.permute.xlu0 1
        %237 = vperm.xlu0 %236, %v168
        %v238 = vpop.permute.xlu0 %237
        %240 = vset.pattern.permute.xlu0 1
        %241 = vperm.xlu0 %240, %v169
        %v242 = vpop.permute.xlu0 %241
        %244 = vset.pattern.permute.xlu0 1
        %245 = vperm.xlu0 %244, %v170
        %v246 = vpop.permute.xlu0 %245
        %248 = vset.pattern.permute.xlu0 1
        %249 = vperm.xlu0 %248, %v171
        %v250 = vpop.permute.xlu0 %249
        %252 = vset.pattern.permute.xlu0 1
        %253 = vperm.xlu0 %252, %v172
        %v254 = vpop.permute.xlu0 %253
        %256 = vset.pattern.permute.xlu0 1
        %257 = vperm.xlu0 %256, %v173
        %v258 = vpop.permute.xlu0 %257
        %260 = vset.pattern.permute.xlu0 1
        %261 = vperm.xlu0 %260, %v174
        %v262 = vpop.permute.xlu0 %261
        %264 = vset.pattern.permute.xlu0 1
        %265 = vperm.xlu0 %264, %v175
        %v266 = vpop.permute.xlu0 %265
        %v268 = vlaneseq
        %v269 = vshrl.u32 %v268, 7
        %v270 = vsub.s32 0, %v269
        %v271 = vrot.slane %v167, %v270
        %v272 = vmul.f32 %v238, %v271
        %v273 = vmul.f32 %v242, %v271
        %v274 = vmul.f32 %v246, %v271
        %v275 = vmul.f32 %v250, %v271
        %v276 = vmul.f32 %v254, %v271
        %v277 = vmul.f32 %v258, %v271
        %v278 = vmul.f32 %v262, %v271
        %v279 = vmul.f32 %v266, %v271
        %v280 = vadd.f32 %v228, %v272
        %v281 = vadd.f32 %v229, %v273
        %v282 = vadd.f32 %v230, %v274
        %v283 = vadd.f32 %v231, %v275
        %v284 = vadd.f32 %v232, %v276
        %v285 = vadd.f32 %v233, %v277
        %v286 = vadd.f32 %v234, %v278
        %v287 = vadd.f32 %v235, %v279
        %289 = vset.pattern.permute.xlu0 0
        %290 = vperm.xlu0 %289, %v176
        %v291 = vpop.permute.xlu0 %290
        %294 = vset.pattern.permute.xlu0 0
        %295 = vperm.xlu0 %294, %v177
        %v296 = vpop.permute.xlu0 %295
        %299 = vset.pattern.permute.xlu0 0
        %300 = vperm.xlu0 %299, %v178
        %v301 = vpop.permute.xlu0 %300
        %304 = vset.pattern.permute.xlu0 0
        %305 = vperm.xlu0 %304, %v179
        %v306 = vpop.permute.xlu0 %305
        %309 = vset.pattern.permute.xlu0 0
        %310 = vperm.xlu0 %309, %v180
        %v311 = vpop.permute.xlu0 %310
        %314 = vset.pattern.permute.xlu0 0
        %315 = vperm.xlu0 %314, %v181
        %v316 = vpop.permute.xlu0 %315
        %319 = vset.pattern.permute.xlu0 0
        %320 = vperm.xlu0 %319, %v182
        %v321 = vpop.permute.xlu0 %320
        %324 = vset.pattern.permute.xlu0 0
        %325 = vperm.xlu0 %324, %v183
        %v326 = vpop.permute.xlu0 %325
        %v328 = vadd.f32 %v280, %v291
        %v329 = vadd.f32 %v281, %v296
        %v330 = vadd.f32 %v282, %v301
        %v331 = vadd.f32 %v283, %v306
        %v332 = vadd.f32 %v284, %v311
        %v333 = vadd.f32 %v285, %v316
        %v334 = vadd.f32 %v286, %v321
        %v335 = vadd.f32 %v287, %v326
        %v336 = vtanh.pop %v328
        %v337 = vtanh.pop %v329
        %v338 = vtanh.pop %v330
        %v339 = vtanh.pop %v331
        %v340 = vtanh.pop %v332
        %v341 = vtanh.pop %v333
        %v342 = vtanh.pop %v334
        %v343 = vtanh.pop %v335
        %v344 = vld [vmem:[%s1 + $0x40] sm:$0xff]
        %v345 = vld [vmem:[%s1 + $0x48] sm:$0xff]
        %v346 = vld [vmem:[%s1 + $0x50] sm:$0xff]
        %v347 = vld [vmem:[%s1 + $0x58] sm:$0xff]
        %v348 = vld [vmem:[%s1 + $0x60] sm:$0xff]
        %v349 = vld [vmem:[%s1 + $0x68] sm:$0xff]
        %v350 = vld [vmem:[%s1 + $0x70] sm:$0xff]
        %v351 = vld [vmem:[%s1 + $0x78] sm:$0xff]
        %v352 = vld [vmem:[%s2 + $0x40] sm:$0xff]
        %v353 = vld [vmem:[%s2 + $0x48] sm:$0xff]
        %v354 = vld [vmem:[%s2 + $0x50] sm:$0xff]
        %v355 = vld [vmem:[%s2 + $0x58] sm:$0xff]
        %v356 = vld [vmem:[%s2 + $0x60] sm:$0xff]
        %v357 = vld [vmem:[%s2 + $0x68] sm:$0xff]
        %v358 = vld [vmem:[%s2 + $0x70] sm:$0xff]
        %v359 = vld [vmem:[%s2 + $0x78] sm:$0xff]
        %361 = vset.pattern.permute.xlu0 0
        %362 = vperm.xlu0 %361, %v352
        %v363 = vpop.permute.xlu0 %362
        %366 = vset.pattern.permute.xlu0 0
        %367 = vperm.xlu0 %366, %v353
        %v368 = vpop.permute.xlu0 %367
        %371 = vset.pattern.permute.xlu0 0
        %372 = vperm.xlu0 %371, %v354
        %v373 = vpop.permute.xlu0 %372
        %376 = vset.pattern.permute.xlu0 0
        %377 = vperm.xlu0 %376, %v355
        %v378 = vpop.permute.xlu0 %377
        %381 = vset.pattern.permute.xlu0 0
        %382 = vperm.xlu0 %381, %v356
        %v383 = vpop.permute.xlu0 %382
        %386 = vset.pattern.permute.xlu0 0
        %387 = vperm.xlu0 %386, %v357
        %v388 = vpop.permute.xlu0 %387
        %391 = vset.pattern.permute.xlu0 0
        %392 = vperm.xlu0 %391, %v358
        %v393 = vpop.permute.xlu0 %392
        %396 = vset.pattern.permute.xlu0 0
        %397 = vperm.xlu0 %396, %v359
        %v398 = vpop.permute.xlu0 %397
        %vm400 = vcmask 523264
        %v402 = vsel %vm400, %v344, 0
        %v405 = vsel %vm400, %v345, 0
        %v408 = vsel %vm400, %v346, 0
        %v411 = vsel %vm400, %v347, 0
        %v414 = vsel %vm400, %v348, 0
        %v417 = vsel %vm400, %v349, 0
        %v420 = vsel %vm400, %v350, 0
        %v423 = vsel %vm400, %v351, 0
        %425 = vmatprep.subr.mxu0 0.0
        %426 = vmatpush1.msra.mxu0 %v336
        %427 = vmatprep.subr.mxu0 0.0
        %428 = vmatpush1.msra.mxu0 %v337
        %429 = vmatprep.subr.mxu0 0.0
        %430 = vmatpush1.msra.mxu0 %v338
        %431 = vmatprep.subr.mxu0 0.0
        %432 = vmatpush1.msra.mxu0 %v339
        %433 = vmatprep.subr.mxu0 0.0
        %434 = vmatpush1.msra.mxu0 %v340
        %435 = vmatprep.subr.mxu0 0.0
        %436 = vmatpush1.msra.mxu0 %v341
        %437 = vmatprep.subr.mxu0 0.0
        %438 = vmatpush1.msra.mxu0 %v342
        %439 = vmatprep.subr.mxu0 0.0
        %440 = vmatpush1.msra.mxu0 %v343
        %441 = vmatprep.subr.mxu0 0.0
        %442 = vmatpush1.msra.mxu0 0.0
        %443 = vmatprep.subr.mxu0 0.0
        %444 = vmatpush1.msra.mxu0 0.0
        %445 = vmatprep.subr.mxu0 0.0
        %446 = vmatpush1.msra.mxu0 0.0
        %447 = vmatprep.subr.mxu0 0.0
        %448 = vmatpush1.msra.mxu0 0.0
        %449 = vmatprep.subr.mxu0 0.0
        %450 = vmatpush1.msra.mxu0 0.0
        %451 = vmatprep.subr.mxu0 0.0
        %452 = vmatpush1.msra.mxu0 0.0
        %453 = vmatprep.subr.mxu0 0.0
        %454 = vmatpush1.msra.mxu0 0.0
        %455 = vmatprep.subr.mxu0 0.0
        %456 = vmatpush1.msra.mxu0 0.0
        %457 = vmatprep.subr.mxu0 0.0
        %458 = vmatpush1.msra.mxu0 0.0
        %459 = vmatprep.subr.mxu0 0.0
        %460 = vmatpush1.msra.mxu0 0.0
        %461 = vmatprep.subr.mxu0 0.0
        %462 = vmatpush1.msra.mxu0 0.0
        %463 = vmatprep.subr.mxu0 0.0
        %464 = vmatpush1.msra.mxu0 0.0
        %465 = vmatprep.subr.mxu0 0.0
        %466 = vmatpush1.msra.mxu0 0.0
        %467 = vmatprep.subr.mxu0 0.0
        %468 = vmatpush1.msra.mxu0 0.0
        %469 = vmatprep.subr.mxu0 0.0
        %470 = vmatpush1.msra.mxu0 0.0
        %471 = vmatprep.subr.mxu0 0.0
        %472 = vmatpush1.msra.mxu0 0.0
        %473 = vmatprep.subr.mxu0 0.0
        %474 = vmatpush1.msra.mxu0 0.0
        %475 = vmatprep.subr.mxu0 0.0
        %476 = vmatpush1.msra.mxu0 0.0
        %477 = vmatprep.subr.mxu0 0.0
        %478 = vmatpush1.msra.mxu0 0.0
        %479 = vmatprep.subr.mxu0 0.0
        %480 = vmatpush1.msra.mxu0 0.0
        %481 = vmatprep.subr.mxu0 0.0
        %482 = vmatpush1.msra.mxu0 0.0
        %483 = vmatprep.subr.mxu0 0.0
        %484 = vmatpush1.msra.mxu0 0.0
        %485 = vmatprep.subr.mxu0 0.0
        %486 = vmatpush1.msra.mxu0 0.0
        %487 = vmatprep.subr.mxu0 0.0
        %488 = vmatpush1.msra.mxu0 0.0
        %489 = vmatprep.mubr.f32.mxu0 0.0
        %490 = vmatmul.mubr.f32.gmra.mrb[0].mxu0 %v402
        %v491 = vpop.f32.mrb[0].mxu0
        %v492 = vadd.f32 %v363, %v491
        %v493 = vpop.f32.mrb[0].mxu0
        %494 = vmatprep.mubr.f32.mxu0 0.0
        %495 = vmatmul.mubr.f32.gmra.mrb[0].mxu0 %v405
        %v496 = vpop.f32.mrb[0].mxu0
        %v497 = vadd.f32 %v368, %v496
        %v498 = vpop.f32.mrb[0].mxu0
        %499 = vmatprep.mubr.f32.mxu0 0.0
        %500 = vmatmul.mubr.f32.gmra.mrb[0].mxu0 %v408
        %v501 = vpop.f32.mrb[0].mxu0
        %v502 = vadd.f32 %v373, %v501
        %v503 = vpop.f32.mrb[0].mxu0
        %504 = vmatprep.mubr.f32.mxu0 0.0
        %505 = vmatmul.mubr.f32.gmra.mrb[0].mxu0 %v411
        %v506 = vpop.f32.mrb[0].mxu0
        %v507 = vadd.f32 %v378, %v506
        %v508 = vpop.f32.mrb[0].mxu0
        %509 = vmatprep.mubr.f32.mxu0 0.0
        %510 = vmatmul.mubr.f32.gmra.mrb[0].mxu0 %v414
        %v511 = vpop.f32.mrb[0].mxu0
        %v512 = vadd.f32 %v383, %v511
        %v513 = vpop.f32.mrb[0].mxu0
        %514 = vmatprep.mubr.f32.mxu0 0.0
        %515 = vmatmul.mubr.f32.gmra.mrb[0].mxu0 %v417
        %v516 = vpop.f32.mrb[0].mxu0
        %v517 = vadd.f32 %v388, %v516
        %v518 = vpop.f32.mrb[0].mxu0
        %519 = vmatprep.mubr.f32.mxu0 0.0
        %520 = vmatmul.mubr.f32.gmra.mrb[0].mxu0 %v420
        %v521 = vpop.f32.mrb[0].mxu0
        %v522 = vadd.f32 %v393, %v521
        %v523 = vpop.f32.mrb[0].mxu0
        %524 = vmatprep.mubr.f32.mxu0 0.0
        %525 = vmatmul.mubr.f32.gmra.mrb[0].mxu0 %v423
        %v526 = vpop.f32.mrb[0].mxu0
        %v527 = vadd.f32 %v398, %v526
        %v528 = vpop.f32.mrb[0].mxu0
        %529 = vdwg.mxu0
        %v530 = vtanh.pop %v492
        %v531 = vtanh.pop %v497
        %v532 = vtanh.pop %v502
        %v533 = vtanh.pop %v507
        %v534 = vtanh.pop %v512
        %v535 = vtanh.pop %v517
        %v536 = vtanh.pop %v522
        %v537 = vtanh.pop %v527
        %v538 = vld [vmem:[%s1 + $0x80] sm:$0xff]
        %v539 = vld [vmem:[%s1 + $0x88] sm:$0xff]
        %v540 = vld [vmem:[%s1 + $0x90] sm:$0xff]
        %v541 = vld [vmem:[%s1 + $0x98] sm:$0xff]
        %v542 = vld [vmem:[%s1 + $0xa0] sm:$0xff]
        %v543 = vld [vmem:[%s1 + $0xa8] sm:$0xff]
        %v544 = vld [vmem:[%s1 + $0xb0] sm:$0xff]
        %v545 = vld [vmem:[%s1 + $0xb8] sm:$0xff]
        %v546 = vld [vmem:[%s2 + $0x80] sm:$0xff]
        %v547 = vld [vmem:[%s2 + $0x88] sm:$0xff]
        %v548 = vld [vmem:[%s2 + $0x90] sm:$0xff]
        %v549 = vld [vmem:[%s2 + $0x98] sm:$0xff]
        %v550 = vld [vmem:[%s2 + $0xa0] sm:$0xff]
        %v551 = vld [vmem:[%s2 + $0xa8] sm:$0xff]
        %v552 = vld [vmem:[%s2 + $0xb0] sm:$0xff]
        %v553 = vld [vmem:[%s2 + $0xb8] sm:$0xff]
        %555 = vset.pattern.permute.xlu0 0
        %556 = vperm.xlu0 %555, %v546
        %v557 = vpop.permute.xlu0 %556
        %560 = vset.pattern.permute.xlu0 0
        %561 = vperm.xlu0 %560, %v547
        %v562 = vpop.permute.xlu0 %561
        %565 = vset.pattern.permute.xlu0 0
        %566 = vperm.xlu0 %565, %v548
        %v567 = vpop.permute.xlu0 %566
        %570 = vset.pattern.permute.xlu0 0
        %571 = vperm.xlu0 %570, %v549
        %v572 = vpop.permute.xlu0 %571
        %575 = vset.pattern.permute.xlu0 0
        %576 = vperm.xlu0 %575, %v550
        %v577 = vpop.permute.xlu0 %576
        %580 = vset.pattern.permute.xlu0 0
        %581 = vperm.xlu0 %580, %v551
        %v582 = vpop.permute.xlu0 %581
        %585 = vset.pattern.permute.xlu0 0
        %586 = vperm.xlu0 %585, %v552
        %v587 = vpop.permute.xlu0 %586
        %590 = vset.pattern.permute.xlu0 0
        %591 = vperm.xlu0 %590, %v553
        %v592 = vpop.permute.xlu0 %591
        %v595 = vsel %vm400, %v538, 0
        %v598 = vsel %vm400, %v539, 0
        %v601 = vsel %vm400, %v540, 0
        %v604 = vsel %vm400, %v541, 0
        %v607 = vsel %vm400, %v542, 0
        %v610 = vsel %vm400, %v543, 0
        %v613 = vsel %vm400, %v544, 0
        %v616 = vsel %vm400, %v545, 0
        %618 = vmatprep.subr.mxu0 0.0
        %619 = vmatpush1.msra.mxu0 %v530
        %620 = vmatprep.subr.mxu0 0.0
        %621 = vmatpush1.msra.mxu0 %v531
        %622 = vmatprep.subr.mxu0 0.0
        %623 = vmatpush1.msra.mxu0 %v532
        %624 = vmatprep.subr.mxu0 0.0
        %625 = vmatpush1.msra.mxu0 %v533
        %626 = vmatprep.subr.mxu0 0.0
        %627 = vmatpush1.msra.mxu0 %v534
        %628 = vmatprep.subr.mxu0 0.0
        %629 = vmatpush1.msra.mxu0 %v535
        %630 = vmatprep.subr.mxu0 0.0
        %631 = vmatpush1.msra.mxu0 %v536
        %632 = vmatprep.subr.mxu0 0.0
        %633 = vmatpush1.msra.mxu0 %v537
        %634 = vmatprep.subr.mxu0 0.0
        %635 = vmatpush1.msra.mxu0 0.0
        %636 = vmatprep.subr.mxu0 0.0
        %637 = vmatpush1.msra.mxu0 0.0
        %638 = vmatprep.subr.mxu0 0.0
        %639 = vmatpush1.msra.mxu0 0.0
        %640 = vmatprep.subr.mxu0 0.0
        %641 = vmatpush1.msra.mxu0 0.0
        %642 = vmatprep.subr.mxu0 0.0
        %643 = vmatpush1.msra.mxu0 0.0
        %644 = vmatprep.subr.mxu0 0.0
        %645 = vmatpush1.msra.mxu0 0.0
        %646 = vmatprep.subr.mxu0 0.0
        %647 = vmatpush1.msra.mxu0 0.0
        %648 = vmatprep.subr.mxu0 0.0
        %649 = vmatpush1.msra.mxu0 0.0
        %650 = vmatprep.subr.mxu0 0.0
        %651 = vmatpush1.msra.mxu0 0.0
        %652 = vmatprep.subr.mxu0 0.0
        %653 = vmatpush1.msra.mxu0 0.0
        %654 = vmatprep.subr.mxu0 0.0
        %655 = vmatpush1.msra.mxu0 0.0
        %656 = vmatprep.subr.mxu0 0.0
        %657 = vmatpush1.msra.mxu0 0.0
        %658 = vmatprep.subr.mxu0 0.0
        %659 = vmatpush1.msra.mxu0 0.0
        %660 = vmatprep.subr.mxu0 0.0
        %661 = vmatpush1.msra.mxu0 0.0
        %662 = vmatprep.subr.mxu0 0.0
        %663 = vmatpush1.msra.mxu0 0.0
        %664 = vmatprep.subr.mxu0 0.0
        %665 = vmatpush1.msra.mxu0 0.0
        %666 = vmatprep.subr.mxu0 0.0
        %667 = vmatpush1.msra.mxu0 0.0
        %668 = vmatprep.subr.mxu0 0.0
        %669 = vmatpush1.msra.mxu0 0.0
        %670 = vmatprep.subr.mxu0 0.0
        %671 = vmatpush1.msra.mxu0 0.0
        %672 = vmatprep.subr.mxu0 0.0
        %673 = vmatpush1.msra.mxu0 0.0
        %674 = vmatprep.subr.mxu0 0.0
        %675 = vmatpush1.msra.mxu0 0.0
        %676 = vmatprep.subr.mxu0 0.0
        %677 = vmatpush1.msra.mxu0 0.0
        %678 = vmatprep.subr.mxu0 0.0
        %679 = vmatpush1.msra.mxu0 0.0
        %680 = vmatprep.subr.mxu0 0.0
        %681 = vmatpush1.msra.mxu0 0.0
        %682 = vmatprep.mubr.f32.mxu0 0.0
        %683 = vmatmul.mubr.f32.gmra.mrb[0].mxu0 %v595
        %v684 = vpop.f32.mrb[0].mxu0
        %v685 = vadd.f32 %v557, %v684
        %v686 = vpop.f32.mrb[0].mxu0
        %687 = vmatprep.mubr.f32.mxu0 0.0
        %688 = vmatmul.mubr.f32.gmra.mrb[0].mxu0 %v598
        %v689 = vpop.f32.mrb[0].mxu0
        %v690 = vadd.f32 %v562, %v689
        %v691 = vpop.f32.mrb[0].mxu0
        %692 = vmatprep.mubr.f32.mxu0 0.0
        %693 = vmatmul.mubr.f32.gmra.mrb[0].mxu0 %v601
        %v694 = vpop.f32.mrb[0].mxu0
        %v695 = vadd.f32 %v567, %v694
        %v696 = vpop.f32.mrb[0].mxu0
        %697 = vmatprep.mubr.f32.mxu0 0.0
        %698 = vmatmul.mubr.f32.gmra.mrb[0].mxu0 %v604
        %v699 = vpop.f32.mrb[0].mxu0
        %v700 = vadd.f32 %v572, %v699
        %v701 = vpop.f32.mrb[0].mxu0
        %702 = vmatprep.mubr.f32.mxu0 0.0
        %703 = vmatmul.mubr.f32.gmra.mrb[0].mxu0 %v607
        %v704 = vpop.f32.mrb[0].mxu0
        %v705 = vadd.f32 %v577, %v704
        %v706 = vpop.f32.mrb[0].mxu0
        %707 = vmatprep.mubr.f32.mxu0 0.0
        %708 = vmatmul.mubr.f32.gmra.mrb[0].mxu0 %v610
        %v709 = vpop.f32.mrb[0].mxu0
        %v710 = vadd.f32 %v582, %v709
        %v711 = vpop.f32.mrb[0].mxu0
        %712 = vmatprep.mubr.f32.mxu0 0.0
        %713 = vmatmul.mubr.f32.gmra.mrb[0].mxu0 %v613
        %v714 = vpop.f32.mrb[0].mxu0
        %v715 = vadd.f32 %v587, %v714
        %v716 = vpop.f32.mrb[0].mxu0
        %717 = vmatprep.mubr.f32.mxu0 0.0
        %718 = vmatmul.mubr.f32.gmra.mrb[0].mxu0 %v616
        %v719 = vpop.f32.mrb[0].mxu0
        %v720 = vadd.f32 %v592, %v719
        %v721 = vpop.f32.mrb[0].mxu0
        %722 = vdwg.mxu0
        %v723 = vtanh.pop %v685
        %v724 = vtanh.pop %v690
        %v725 = vtanh.pop %v695
        %v726 = vtanh.pop %v700
        %v727 = vtanh.pop %v705
        %v728 = vtanh.pop %v710
        %v729 = vtanh.pop %v715
        %v730 = vtanh.pop %v720
        %v731 = vld [vmem:[%s1 + $0xc0] sm:$0xff]
        %v732 = vld [vmem:[%s1 + $0xc8] sm:$0xff]
        %v733 = vld [vmem:[%s1 + $0xd0] sm:$0xff]
        %v734 = vld [vmem:[%s1 + $0xd8] sm:$0xff]
        %v735 = vld [vmem:[%s1 + $0xe0] sm:$0xff]
        %v736 = vld [vmem:[%s1 + $0xe8] sm:$0xff]
        %v737 = vld [vmem:[%s1 + $0xf0] sm:$0xff]
        %v738 = vld [vmem:[%s1 + $0xf8] sm:$0xff]
        %v739 = vld [vmem:[%s2 + $0xc0] sm:$0xff]
        %v740 = vld [vmem:[%s2 + $0xc8] sm:$0xff]
        %v741 = vld [vmem:[%s2 + $0xd0] sm:$0xff]
        %v742 = vld [vmem:[%s2 + $0xd8] sm:$0xff]
        %v743 = vld [vmem:[%s2 + $0xe0] sm:$0xff]
        %v744 = vld [vmem:[%s2 + $0xe8] sm:$0xff]
        %v745 = vld [vmem:[%s2 + $0xf0] sm:$0xff]
        %v746 = vld [vmem:[%s2 + $0xf8] sm:$0xff]
        %748 = vset.pattern.permute.xlu0 0
        %749 = vperm.xlu0 %748, %v739
        %v750 = vpop.permute.xlu0 %749
        %753 = vset.pattern.permute.xlu0 0
        %754 = vperm.xlu0 %753, %v740
        %v755 = vpop.permute.xlu0 %754
        %758 = vset.pattern.permute.xlu0 0
        %759 = vperm.xlu0 %758, %v741
        %v760 = vpop.permute.xlu0 %759
        %763 = vset.pattern.permute.xlu0 0
        %764 = vperm.xlu0 %763, %v742
        %v765 = vpop.permute.xlu0 %764
        %768 = vset.pattern.permute.xlu0 0
        %769 = vperm.xlu0 %768, %v743
        %v770 = vpop.permute.xlu0 %769
        %773 = vset.pattern.permute.xlu0 0
        %774 = vperm.xlu0 %773, %v744
        %v775 = vpop.permute.xlu0 %774
        %778 = vset.pattern.permute.xlu0 0
        %779 = vperm.xlu0 %778, %v745
        %v780 = vpop.permute.xlu0 %779
        %783 = vset.pattern.permute.xlu0 0
        %784 = vperm.xlu0 %783, %v746
        %v785 = vpop.permute.xlu0 %784
        %v788 = vsel %vm400, %v731, 0
        %v791 = vsel %vm400, %v732, 0
        %v794 = vsel %vm400, %v733, 0
        %v797 = vsel %vm400, %v734, 0
        %v800 = vsel %vm400, %v735, 0
        %v803 = vsel %vm400, %v736, 0
        %v806 = vsel %vm400, %v737, 0
        %v809 = vsel %vm400, %v738, 0
        %811 = vmatprep.subr.mxu0 0.0
        %812 = vmatpush1.msra.mxu0 %v723
        %813 = vmatprep.subr.mxu0 0.0
        %814 = vmatpush1.msra.mxu0 %v724
        %815 = vmatprep.subr.mxu0 0.0
        %816 = vmatpush1.msra.mxu0 %v725
        %817 = vmatprep.subr.mxu0 0.0
        %818 = vmatpush1.msra.mxu0 %v726
        %819 = vmatprep.subr.mxu0 0.0
        %820 = vmatpush1.msra.mxu0 %v727
        %821 = vmatprep.subr.mxu0 0.0
        %822 = vmatpush1.msra.mxu0 %v728
        %823 = vmatprep.subr.mxu0 0.0
        %824 = vmatpush1.msra.mxu0 %v729
        %825 = vmatprep.subr.mxu0 0.0
        %826 = vmatpush1.msra.mxu0 %v730
        %827 = vmatprep.subr.mxu0 0.0
        %828 = vmatpush1.msra.mxu0 0.0
        %829 = vmatprep.subr.mxu0 0.0
        %830 = vmatpush1.msra.mxu0 0.0
        %831 = vmatprep.subr.mxu0 0.0
        %832 = vmatpush1.msra.mxu0 0.0
        %833 = vmatprep.subr.mxu0 0.0
        %834 = vmatpush1.msra.mxu0 0.0
        %835 = vmatprep.subr.mxu0 0.0
        %836 = vmatpush1.msra.mxu0 0.0
        %837 = vmatprep.subr.mxu0 0.0
        %838 = vmatpush1.msra.mxu0 0.0
        %839 = vmatprep.subr.mxu0 0.0
        %840 = vmatpush1.msra.mxu0 0.0
        %841 = vmatprep.subr.mxu0 0.0
        %842 = vmatpush1.msra.mxu0 0.0
        %843 = vmatprep.subr.mxu0 0.0
        %844 = vmatpush1.msra.mxu0 0.0
        %845 = vmatprep.subr.mxu0 0.0
        %846 = vmatpush1.msra.mxu0 0.0
        %847 = vmatprep.subr.mxu0 0.0
        %848 = vmatpush1.msra.mxu0 0.0
        %849 = vmatprep.subr.mxu0 0.0
        %850 = vmatpush1.msra.mxu0 0.0
        %851 = vmatprep.subr.mxu0 0.0
        %852 = vmatpush1.msra.mxu0 0.0
        %853 = vmatprep.subr.mxu0 0.0
        %854 = vmatpush1.msra.mxu0 0.0
        %855 = vmatprep.subr.mxu0 0.0
        %856 = vmatpush1.msra.mxu0 0.0
        %857 = vmatprep.subr.mxu0 0.0
        %858 = vmatpush1.msra.mxu0 0.0
        %859 = vmatprep.subr.mxu0 0.0
        %860 = vmatpush1.msra.mxu0 0.0
        %861 = vmatprep.subr.mxu0 0.0
        %862 = vmatpush1.msra.mxu0 0.0
        %863 = vmatprep.subr.mxu0 0.0
        %864 = vmatpush1.msra.mxu0 0.0
        %865 = vmatprep.subr.mxu0 0.0
        %866 = vmatpush1.msra.mxu0 0.0
        %867 = vmatprep.subr.mxu0 0.0
        %868 = vmatpush1.msra.mxu0 0.0
        %869 = vmatprep.subr.mxu0 0.0
        %870 = vmatpush1.msra.mxu0 0.0
        %871 = vmatprep.subr.mxu0 0.0
        %872 = vmatpush1.msra.mxu0 0.0
        %873 = vmatprep.subr.mxu0 0.0
        %874 = vmatpush1.msra.mxu0 0.0
        %875 = vmatprep.mubr.f32.mxu0 0.0
        %876 = vmatmul.mubr.f32.gmra.mrb[0].mxu0 %v788
        %v877 = vpop.f32.mrb[0].mxu0
        %v878 = vadd.f32 %v750, %v877
        %v879 = vpop.f32.mrb[0].mxu0
        %880 = vmatprep.mubr.f32.mxu0 0.0
        %881 = vmatmul.mubr.f32.gmra.mrb[0].mxu0 %v791
        %v882 = vpop.f32.mrb[0].mxu0
        %v883 = vadd.f32 %v755, %v882
        %v884 = vpop.f32.mrb[0].mxu0
        %885 = vmatprep.mubr.f32.mxu0 0.0
        %886 = vmatmul.mubr.f32.gmra.mrb[0].mxu0 %v794
        %v887 = vpop.f32.mrb[0].mxu0
        %v888 = vadd.f32 %v760, %v887
        %v889 = vpop.f32.mrb[0].mxu0
        %890 = vmatprep.mubr.f32.mxu0 0.0
        %891 = vmatmul.mubr.f32.gmra.mrb[0].mxu0 %v797
        %v892 = vpop.f32.mrb[0].mxu0
        %v893 = vadd.f32 %v765, %v892
        %v894 = vpop.f32.mrb[0].mxu0
        %895 = vmatprep.mubr.f32.mxu0 0.0
        %896 = vmatmul.mubr.f32.gmra.mrb[0].mxu0 %v800
        %v897 = vpop.f32.mrb[0].mxu0
        %v898 = vadd.f32 %v770, %v897
        %v899 = vpop.f32.mrb[0].mxu0
        %900 = vmatprep.mubr.f32.mxu0 0.0
        %901 = vmatmul.mubr.f32.gmra.mrb[0].mxu0 %v803
        %v902 = vpop.f32.mrb[0].mxu0
        %v903 = vadd.f32 %v775, %v902
        %v904 = vpop.f32.mrb[0].mxu0
        %905 = vmatprep.mubr.f32.mxu0 0.0
        %906 = vmatmul.mubr.f32.gmra.mrb[0].mxu0 %v806
        %v907 = vpop.f32.mrb[0].mxu0
        %v908 = vadd.f32 %v780, %v907
        %v909 = vpop.f32.mrb[0].mxu0
        %910 = vmatprep.mubr.f32.mxu0 0.0
        %911 = vmatmul.mubr.f32.gmra.mrb[0].mxu0 %v809
        %v912 = vpop.f32.mrb[0].mxu0
        %v913 = vadd.f32 %v785, %v912
        %v914 = vpop.f32.mrb[0].mxu0
        %915 = vdwg.mxu0
        %v916 = vtanh.pop %v878
        %v917 = vtanh.pop %v883
        %v918 = vtanh.pop %v888
        %v919 = vtanh.pop %v893
        %v920 = vtanh.pop %v898
        %v921 = vtanh.pop %v903
        %v922 = vtanh.pop %v908
        %v923 = vtanh.pop %v913
        %v924 = vld [vmem:[%s1 + $0x100] sm:$0xff]
        %v925 = vld [vmem:[%s1 + $0x108] sm:$0xff]
        %v926 = vld [vmem:[%s1 + $0x110] sm:$0xff]
        %v927 = vld [vmem:[%s1 + $0x118] sm:$0xff]
        %v928 = vld [vmem:[%s1 + $0x120] sm:$0xff]
        %v929 = vld [vmem:[%s1 + $0x128] sm:$0xff]
        %v930 = vld [vmem:[%s1 + $0x130] sm:$0xff]
        %v931 = vld [vmem:[%s1 + $0x138] sm:$0xff]
        %v932 = vld [vmem:[%s2 + $0x100] sm:$0xff]
        %v933 = vld [vmem:[%s2 + $0x108] sm:$0xff]
        %v934 = vld [vmem:[%s2 + $0x110] sm:$0xff]
        %v935 = vld [vmem:[%s2 + $0x118] sm:$0xff]
        %v936 = vld [vmem:[%s2 + $0x120] sm:$0xff]
        %v937 = vld [vmem:[%s2 + $0x128] sm:$0xff]
        %v938 = vld [vmem:[%s2 + $0x130] sm:$0xff]
        %v939 = vld [vmem:[%s2 + $0x138] sm:$0xff]
        %941 = vset.pattern.permute.xlu0 0
        %942 = vperm.xlu0 %941, %v932
        %v943 = vpop.permute.xlu0 %942
        %946 = vset.pattern.permute.xlu0 0
        %947 = vperm.xlu0 %946, %v933
        %v948 = vpop.permute.xlu0 %947
        %951 = vset.pattern.permute.xlu0 0
        %952 = vperm.xlu0 %951, %v934
        %v953 = vpop.permute.xlu0 %952
        %956 = vset.pattern.permute.xlu0 0
        %957 = vperm.xlu0 %956, %v935
        %v958 = vpop.permute.xlu0 %957
        %961 = vset.pattern.permute.xlu0 0
        %962 = vperm.xlu0 %961, %v936
        %v963 = vpop.permute.xlu0 %962
        %966 = vset.pattern.permute.xlu0 0
        %967 = vperm.xlu0 %966, %v937
        %v968 = vpop.permute.xlu0 %967
        %971 = vset.pattern.permute.xlu0 0
        %972 = vperm.xlu0 %971, %v938
        %v973 = vpop.permute.xlu0 %972
        %976 = vset.pattern.permute.xlu0 0
        %977 = vperm.xlu0 %976, %v939
        %v978 = vpop.permute.xlu0 %977
        %v981 = vsel %vm400, %v924, 0
        %v984 = vsel %vm400, %v925, 0
        %v987 = vsel %vm400, %v926, 0
        %v990 = vsel %vm400, %v927, 0
        %v993 = vsel %vm400, %v928, 0
        %v996 = vsel %vm400, %v929, 0
        %v999 = vsel %vm400, %v930, 0
        %v1002 = vsel %vm400, %v931, 0
        %1004 = vmatprep.subr.mxu0 0.0
        %1005 = vmatpush1.msra.mxu0 %v916
        %1006 = vmatprep.subr.mxu0 0.0
        %1007 = vmatpush1.msra.mxu0 %v917
        %1008 = vmatprep.subr.mxu0 0.0
        %1009 = vmatpush1.msra.mxu0 %v918
        %1010 = vmatprep.subr.mxu0 0.0
        %1011 = vmatpush1.msra.mxu0 %v919
        %1012 = vmatprep.subr.mxu0 0.0
        %1013 = vmatpush1.msra.mxu0 %v920
        %1014 = vmatprep.subr.mxu0 0.0
        %1015 = vmatpush1.msra.mxu0 %v921
        %1016 = vmatprep.subr.mxu0 0.0
        %1017 = vmatpush1.msra.mxu0 %v922
        %1018 = vmatprep.subr.mxu0 0.0
        %1019 = vmatpush1.msra.mxu0 %v923
        %1020 = vmatprep.subr.mxu0 0.0
        %1021 = vmatpush1.msra.mxu0 0.0
        %1022 = vmatprep.subr.mxu0 0.0
        %1023 = vmatpush1.msra.mxu0 0.0
        %1024 = vmatprep.subr.mxu0 0.0
        %1025 = vmatpush1.msra.mxu0 0.0
        %1026 = vmatprep.subr.mxu0 0.0
        %1027 = vmatpush1.msra.mxu0 0.0
        %1028 = vmatprep.subr.mxu0 0.0
        %1029 = vmatpush1.msra.mxu0 0.0
        %1030 = vmatprep.subr.mxu0 0.0
        %1031 = vmatpush1.msra.mxu0 0.0
        %1032 = vmatprep.subr.mxu0 0.0
        %1033 = vmatpush1.msra.mxu0 0.0
        %1034 = vmatprep.subr.mxu0 0.0
        %1035 = vmatpush1.msra.mxu0 0.0
        %1036 = vmatprep.subr.mxu0 0.0
        %1037 = vmatpush1.msra.mxu0 0.0
        %1038 = vmatprep.subr.mxu0 0.0
        %1039 = vmatpush1.msra.mxu0 0.0
        %1040 = vmatprep.subr.mxu0 0.0
        %1041 = vmatpush1.msra.mxu0 0.0
        %1042 = vmatprep.subr.mxu0 0.0
        %1043 = vmatpush1.msra.mxu0 0.0
        %1044 = vmatprep.subr.mxu0 0.0
        %1045 = vmatpush1.msra.mxu0 0.0
        %1046 = vmatprep.subr.mxu0 0.0
        %1047 = vmatpush1.msra.mxu0 0.0
        %1048 = vmatprep.subr.mxu0 0.0
        %1049 = vmatpush1.msra.mxu0 0.0
        %1050 = vmatprep.subr.mxu0 0.0
        %1051 = vmatpush1.msra.mxu0 0.0
        %1052 = vmatprep.subr.mxu0 0.0
        %1053 = vmatpush1.msra.mxu0 0.0
        %1054 = vmatprep.subr.mxu0 0.0
        %1055 = vmatpush1.msra.mxu0 0.0
        %1056 = vmatprep.subr.mxu0 0.0
        %1057 = vmatpush1.msra.mxu0 0.0
        %1058 = vmatprep.subr.mxu0 0.0
        %1059 = vmatpush1.msra.mxu0 0.0
        %1060 = vmatprep.subr.mxu0 0.0
        %1061 = vmatpush1.msra.mxu0 0.0
        %1062 = vmatprep.subr.mxu0 0.0
        %1063 = vmatpush1.msra.mxu0 0.0
        %1064 = vmatprep.subr.mxu0 0.0
        %1065 = vmatpush1.msra.mxu0 0.0
        %1066 = vmatprep.subr.mxu0 0.0
        %1067 = vmatpush1.msra.mxu0 0.0
        %1068 = vmatprep.mubr.f32.mxu0 0.0
        %1069 = vmatmul.mubr.f32.gmra.mrb[0].mxu0 %v981
        %v1070 = vpop.f32.mrb[0].mxu0
        %v1071 = vadd.f32 %v943, %v1070
        %v1072 = vpop.f32.mrb[0].mxu0
        %1073 = vmatprep.mubr.f32.mxu0 0.0
        %1074 = vmatmul.mubr.f32.gmra.mrb[0].mxu0 %v984
        %v1075 = vpop.f32.mrb[0].mxu0
        %v1076 = vadd.f32 %v948, %v1075
        %v1077 = vpop.f32.mrb[0].mxu0
        %1078 = vmatprep.mubr.f32.mxu0 0.0
        %1079 = vmatmul.mubr.f32.gmra.mrb[0].mxu0 %v987
        %v1080 = vpop.f32.mrb[0].mxu0
        %v1081 = vadd.f32 %v953, %v1080
        %v1082 = vpop.f32.mrb[0].mxu0
        %1083 = vmatprep.mubr.f32.mxu0 0.0
        %1084 = vmatmul.mubr.f32.gmra.mrb[0].mxu0 %v990
        %v1085 = vpop.f32.mrb[0].mxu0
        %v1086 = vadd.f32 %v958, %v1085
        %v1087 = vpop.f32.mrb[0].mxu0
        %1088 = vmatprep.mubr.f32.mxu0 0.0
        %1089 = vmatmul.mubr.f32.gmra.mrb[0].mxu0 %v993
        %v1090 = vpop.f32.mrb[0].mxu0
        %v1091 = vadd.f32 %v963, %v1090
        %v1092 = vpop.f32.mrb[0].mxu0
        %1093 = vmatprep.mubr.f32.mxu0 0.0
        %1094 = vmatmul.mubr.f32.gmra.mrb[0].mxu0 %v996
        %v1095 = vpop.f32.mrb[0].mxu0
        %v1096 = vadd.f32 %v968, %v1095
        %v1097 = vpop.f32.mrb[0].mxu0
        %1098 = vmatprep.mubr.f32.mxu0 0.0
        %1099 = vmatmul.mubr.f32.gmra.mrb[0].mxu0 %v999
        %v1100 = vpop.f32.mrb[0].mxu0
        %v1101 = vadd.f32 %v973, %v1100
        %v1102 = vpop.f32.mrb[0].mxu0
        %1103 = vmatprep.mubr.f32.mxu0 0.0
        %1104 = vmatmul.mubr.f32.gmra.mrb[0].mxu0 %v1002
        %v1105 = vpop.f32.mrb[0].mxu0
        %v1106 = vadd.f32 %v978, %v1105
        %v1107 = vpop.f32.mrb[0].mxu0
        %1108 = vdwg.mxu0
        %v1109 = vtanh.pop %v1071
        %v1110 = vtanh.pop %v1076
        %v1111 = vtanh.pop %v1081
        %v1112 = vtanh.pop %v1086
        %v1113 = vtanh.pop %v1091
        %v1114 = vtanh.pop %v1096
        %v1115 = vtanh.pop %v1101
        %v1116 = vtanh.pop %v1106
        %v1117 = vld [vmem:[%s1 + $0x140] sm:$0xff]
        %v1118 = vld [vmem:[%s1 + $0x148] sm:$0xff]
        %v1119 = vld [vmem:[%s1 + $0x150] sm:$0xff]
        %v1120 = vld [vmem:[%s1 + $0x158] sm:$0xff]
        %v1121 = vld [vmem:[%s1 + $0x160] sm:$0xff]
        %v1122 = vld [vmem:[%s1 + $0x168] sm:$0xff]
        %v1123 = vld [vmem:[%s1 + $0x170] sm:$0xff]
        %v1124 = vld [vmem:[%s1 + $0x178] sm:$0xff]
        %v1125 = vld [vmem:[%s2 + $0x140] sm:$0xff]
        %v1126 = vld [vmem:[%s2 + $0x148] sm:$0xff]
        %v1127 = vld [vmem:[%s2 + $0x150] sm:$0xff]
        %v1128 = vld [vmem:[%s2 + $0x158] sm:$0xff]
        %v1129 = vld [vmem:[%s2 + $0x160] sm:$0xff]
        %v1130 = vld [vmem:[%s2 + $0x168] sm:$0xff]
        %v1131 = vld [vmem:[%s2 + $0x170] sm:$0xff]
        %v1132 = vld [vmem:[%s2 + $0x178] sm:$0xff]
        %1134 = vset.pattern.permute.xlu0 0
        %1135 = vperm.xlu0 %1134, %v1125
        %v1136 = vpop.permute.xlu0 %1135
        %1139 = vset.pattern.permute.xlu0 0
        %1140 = vperm.xlu0 %1139, %v1126
        %v1141 = vpop.permute.xlu0 %1140
        %1144 = vset.pattern.permute.xlu0 0
        %1145 = vperm.xlu0 %1144, %v1127
        %v1146 = vpop.permute.xlu0 %1145
        %1149 = vset.pattern.permute.xlu0 0
        %1150 = vperm.xlu0 %1149, %v1128
        %v1151 = vpop.permute.xlu0 %1150
        %1154 = vset.pattern.permute.xlu0 0
        %1155 = vperm.xlu0 %1154, %v1129
        %v1156 = vpop.permute.xlu0 %1155
        %1159 = vset.pattern.permute.xlu0 0
        %1160 = vperm.xlu0 %1159, %v1130
        %v1161 = vpop.permute.xlu0 %1160
        %1164 = vset.pattern.permute.xlu0 0
        %1165 = vperm.xlu0 %1164, %v1131
        %v1166 = vpop.permute.xlu0 %1165
        %1169 = vset.pattern.permute.xlu0 0
        %1170 = vperm.xlu0 %1169, %v1132
        %v1171 = vpop.permute.xlu0 %1170
        %v1174 = vsel %vm400, %v1117, 0
        %v1177 = vsel %vm400, %v1118, 0
        %v1180 = vsel %vm400, %v1119, 0
        %v1183 = vsel %vm400, %v1120, 0
        %v1186 = vsel %vm400, %v1121, 0
        %v1189 = vsel %vm400, %v1122, 0
        %v1192 = vsel %vm400, %v1123, 0
        %v1195 = vsel %vm400, %v1124, 0
        %1197 = vmatprep.subr.mxu0 0.0
        %1198 = vmatpush1.msra.mxu0 %v1109
        %1199 = vmatprep.subr.mxu0 0.0
        %1200 = vmatpush1.msra.mxu0 %v1110
        %1201 = vmatprep.subr.mxu0 0.0
        %1202 = vmatpush1.msra.mxu0 %v1111
        %1203 = vmatprep.subr.mxu0 0.0
        %1204 = vmatpush1.msra.mxu0 %v1112
        %1205 = vmatprep.subr.mxu0 0.0
        %1206 = vmatpush1.msra.mxu0 %v1113
        %1207 = vmatprep.subr.mxu0 0.0
        %1208 = vmatpush1.msra.mxu0 %v1114
        %1209 = vmatprep.subr.mxu0 0.0
        %1210 = vmatpush1.msra.mxu0 %v1115
        %1211 = vmatprep.subr.mxu0 0.0
        %1212 = vmatpush1.msra.mxu0 %v1116
        %1213 = vmatprep.subr.mxu0 0.0
        %1214 = vmatpush1.msra.mxu0 0.0
        %1215 = vmatprep.subr.mxu0 0.0
        %1216 = vmatpush1.msra.mxu0 0.0
        %1217 = vmatprep.subr.mxu0 0.0
        %1218 = vmatpush1.msra.mxu0 0.0
        %1219 = vmatprep.subr.mxu0 0.0
        %1220 = vmatpush1.msra.mxu0 0.0
        %1221 = vmatprep.subr.mxu0 0.0
        %1222 = vmatpush1.msra.mxu0 0.0
        %1223 = vmatprep.subr.mxu0 0.0
        %1224 = vmatpush1.msra.mxu0 0.0
        %1225 = vmatprep.subr.mxu0 0.0
        %1226 = vmatpush1.msra.mxu0 0.0
        %1227 = vmatprep.subr.mxu0 0.0
        %1228 = vmatpush1.msra.mxu0 0.0
        %1229 = vmatprep.subr.mxu0 0.0
        %1230 = vmatpush1.msra.mxu0 0.0
        %1231 = vmatprep.subr.mxu0 0.0
        %1232 = vmatpush1.msra.mxu0 0.0
        %1233 = vmatprep.subr.mxu0 0.0
        %1234 = vmatpush1.msra.mxu0 0.0
        %1235 = vmatprep.subr.mxu0 0.0
        %1236 = vmatpush1.msra.mxu0 0.0
        %1237 = vmatprep.subr.mxu0 0.0
        %1238 = vmatpush1.msra.mxu0 0.0
        %1239 = vmatprep.subr.mxu0 0.0
        %1240 = vmatpush1.msra.mxu0 0.0
        %1241 = vmatprep.subr.mxu0 0.0
        %1242 = vmatpush1.msra.mxu0 0.0
        %1243 = vmatprep.subr.mxu0 0.0
        %1244 = vmatpush1.msra.mxu0 0.0
        %1245 = vmatprep.subr.mxu0 0.0
        %1246 = vmatpush1.msra.mxu0 0.0
        %1247 = vmatprep.subr.mxu0 0.0
        %1248 = vmatpush1.msra.mxu0 0.0
        %1249 = vmatprep.subr.mxu0 0.0
        %1250 = vmatpush1.msra.mxu0 0.0
        %1251 = vmatprep.subr.mxu0 0.0
        %1252 = vmatpush1.msra.mxu0 0.0
        %1253 = vmatprep.subr.mxu0 0.0
        %1254 = vmatpush1.msra.mxu0 0.0
        %1255 = vmatprep.subr.mxu0 0.0
        %1256 = vmatpush1.msra.mxu0 0.0
        %1257 = vmatprep.subr.mxu0 0.0
        %1258 = vmatpush1.msra.mxu0 0.0
        %1259 = vmatprep.subr.mxu0 0.0
        %1260 = vmatpush1.msra.mxu0 0.0
        %1261 = vmatprep.mubr.f32.mxu0 0.0
        %1262 = vmatmul.mubr.f32.gmra.mrb[0].mxu0 %v1174
        %v1263 = vpop.f32.mrb[0].mxu0
        %v1264 = vadd.f32 %v1136, %v1263
        %v1265 = vpop.f32.mrb[0].mxu0
        %1266 = vmatprep.mubr.f32.mxu0 0.0
        %1267 = vmatmul.mubr.f32.gmra.mrb[0].mxu0 %v1177
        %v1268 = vpop.f32.mrb[0].mxu0
        %v1269 = vadd.f32 %v1141, %v1268
        %v1270 = vpop.f32.mrb[0].mxu0
        %1271 = vmatprep.mubr.f32.mxu0 0.0
        %1272 = vmatmul.mubr.f32.gmra.mrb[0].mxu0 %v1180
        %v1273 = vpop.f32.mrb[0].mxu0
        %v1274 = vadd.f32 %v1146, %v1273
        %v1275 = vpop.f32.mrb[0].mxu0
        %1276 = vmatprep.mubr.f32.mxu0 0.0
        %1277 = vmatmul.mubr.f32.gmra.mrb[0].mxu0 %v1183
        %v1278 = vpop.f32.mrb[0].mxu0
        %v1279 = vadd.f32 %v1151, %v1278
        %v1280 = vpop.f32.mrb[0].mxu0
        %1281 = vmatprep.mubr.f32.mxu0 0.0
        %1282 = vmatmul.mubr.f32.gmra.mrb[0].mxu0 %v1186
        %v1283 = vpop.f32.mrb[0].mxu0
        %v1284 = vadd.f32 %v1156, %v1283
        %v1285 = vpop.f32.mrb[0].mxu0
        %1286 = vmatprep.mubr.f32.mxu0 0.0
        %1287 = vmatmul.mubr.f32.gmra.mrb[0].mxu0 %v1189
        %v1288 = vpop.f32.mrb[0].mxu0
        %v1289 = vadd.f32 %v1161, %v1288
        %v1290 = vpop.f32.mrb[0].mxu0
        %1291 = vmatprep.mubr.f32.mxu0 0.0
        %1292 = vmatmul.mubr.f32.gmra.mrb[0].mxu0 %v1192
        %v1293 = vpop.f32.mrb[0].mxu0
        %v1294 = vadd.f32 %v1166, %v1293
        %v1295 = vpop.f32.mrb[0].mxu0
        %1296 = vmatprep.mubr.f32.mxu0 0.0
        %1297 = vmatmul.mubr.f32.gmra.mrb[0].mxu0 %v1195
        %v1298 = vpop.f32.mrb[0].mxu0
        %v1299 = vadd.f32 %v1171, %v1298
        %v1300 = vpop.f32.mrb[0].mxu0
        %1301 = vdwg.mxu0
        %v1302 = vtanh.pop %v1264
        %v1303 = vtanh.pop %v1269
        %v1304 = vtanh.pop %v1274
        %v1305 = vtanh.pop %v1279
        %v1306 = vtanh.pop %v1284
        %v1307 = vtanh.pop %v1289
        %v1308 = vtanh.pop %v1294
        %v1309 = vtanh.pop %v1299
        %v1310 = vld [vmem:[%s1 + $0x180] sm:$0xff]
        %v1311 = vld [vmem:[%s2 + $0x180] sm:$0xff]
        %1313 = vset.pattern.permute.xlu0 0
        %1314 = vperm.xlu0 %1313, %v1311
        %v1315 = vpop.permute.xlu0 %1314
        %v1318 = vsel %vm400, %v1310, 0
        %1320 = vmatprep.subr.mxu0 0.0
        %1321 = vmatpush1.msra.mxu0 %v1302
        %1322 = vmatprep.subr.mxu0 0.0
        %1323 = vmatpush1.msra.mxu0 %v1303
        %1324 = vmatprep.subr.mxu0 0.0
        %1325 = vmatpush1.msra.mxu0 %v1304
        %1326 = vmatprep.subr.mxu0 0.0
        %1327 = vmatpush1.msra.mxu0 %v1305
        %1328 = vmatprep.subr.mxu0 0.0
        %1329 = vmatpush1.msra.mxu0 %v1306
        %1330 = vmatprep.subr.mxu0 0.0
        %1331 = vmatpush1.msra.mxu0 %v1307
        %1332 = vmatprep.subr.mxu0 0.0
        %1333 = vmatpush1.msra.mxu0 %v1308
        %1334 = vmatprep.subr.mxu0 0.0
        %1335 = vmatpush1.msra.mxu0 %v1309
        %1336 = vmatprep.subr.mxu0 0.0
        %1337 = vmatpush1.msra.mxu0 0.0
        %1338 = vmatprep.subr.mxu0 0.0
        %1339 = vmatpush1.msra.mxu0 0.0
        %1340 = vmatprep.subr.mxu0 0.0
        %1341 = vmatpush1.msra.mxu0 0.0
        %1342 = vmatprep.subr.mxu0 0.0
        %1343 = vmatpush1.msra.mxu0 0.0
        %1344 = vmatprep.subr.mxu0 0.0
        %1345 = vmatpush1.msra.mxu0 0.0
        %1346 = vmatprep.subr.mxu0 0.0
        %1347 = vmatpush1.msra.mxu0 0.0
        %1348 = vmatprep.subr.mxu0 0.0
        %1349 = vmatpush1.msra.mxu0 0.0
        %1350 = vmatprep.subr.mxu0 0.0
        %1351 = vmatpush1.msra.mxu0 0.0
        %1352 = vmatprep.subr.mxu0 0.0
        %1353 = vmatpush1.msra.mxu0 0.0
        %1354 = vmatprep.subr.mxu0 0.0
        %1355 = vmatpush1.msra.mxu0 0.0
        %1356 = vmatprep.subr.mxu0 0.0
        %1357 = vmatpush1.msra.mxu0 0.0
        %1358 = vmatprep.subr.mxu0 0.0
        %1359 = vmatpush1.msra.mxu0 0.0
        %1360 = vmatprep.subr.mxu0 0.0
        %1361 = vmatpush1.msra.mxu0 0.0
        %1362 = vmatprep.subr.mxu0 0.0
        %1363 = vmatpush1.msra.mxu0 0.0
        %1364 = vmatprep.subr.mxu0 0.0
        %1365 = vmatpush1.msra.mxu0 0.0
        %1366 = vmatprep.subr.mxu0 0.0
        %1367 = vmatpush1.msra.mxu0 0.0
        %1368 = vmatprep.subr.mxu0 0.0
        %1369 = vmatpush1.msra.mxu0 0.0
        %1370 = vmatprep.subr.mxu0 0.0
        %1371 = vmatpush1.msra.mxu0 0.0
        %1372 = vmatprep.subr.mxu0 0.0
        %1373 = vmatpush1.msra.mxu0 0.0
        %1374 = vmatprep.subr.mxu0 0.0
        %1375 = vmatpush1.msra.mxu0 0.0
        %1376 = vmatprep.subr.mxu0 0.0
        %1377 = vmatpush1.msra.mxu0 0.0
        %1378 = vmatprep.subr.mxu0 0.0
        %1379 = vmatpush1.msra.mxu0 0.0
        %1380 = vmatprep.subr.mxu0 0.0
        %1381 = vmatpush1.msra.mxu0 0.0
        %1382 = vmatprep.subr.mxu0 0.0
        %1383 = vmatpush1.msra.mxu0 0.0
        %1384 = vmatprep.mubr.f32.mxu0 0.0
        %1385 = vmatmul.mubr.f32.gmra.mrb[0].mxu0 %v1318
        %v1386 = vpop.f32.mrb[0].mxu0
        %v1387 = vadd.f32 %v1315, %v1386
        %v1388 = vpop.f32.mrb[0].mxu0
        %1389 = vdwg.mxu0
        %1390 = vst [vmem:[%s161] sm:$0x3] %v1387
        %s1391 = sand.u32 %s93, 1
        %s1392 = scalar_lea.sflag [#allocation3], %s1391
        %s1393 = sand.u32 %s93, 1
        %s1394 = smul.addr %s1393, 2
        %s1395 = scalar_lea.vmem [#allocation2], %s1394
        // Predicated region
        $region33: #{tpu_custom_call.1} parent=31 // pred_check
          %p1396 = pneg %p103
        $region34: #{tpu_custom_call.1} parent=31 // pred_check_branch
          %1398 = sbr.rel (%p1396) target = $region36
        $region35: #{tpu_custom_call.1} parent=31 // pred_region
          %s1400 = ssub.s32 32, 32
          %1401 = vsyncadd %s1392, %s1400
          %s1402 = smul.addr %s17, 32
          %s1403 = scalar_lea.hbm %s3, %s1402
          %s1405 = sshll.u32 %s1395, 4
          %s1406 = int_to_ptr.vmem [resolvable:$true] %s1405
          %1408 = dma.vmem_to_hbm [thread:$0]  %s1406, 32, %s1403, %s1392
        $region36: #{tpu_custom_call.1} parent=31 // pred_fallthru
          _
      $region32: #{tpu_custom_call.1} parent=5 // pred_fallthru
        _
      %p1409 = scmp.le.s32.totalorder 2, %s12
      // Predicated region
      $region37: #{tpu_custom_call.1} parent=5 // pred_check
        %p1410 = pneg %p1409
      $region38: #{tpu_custom_call.1} parent=5 // pred_check_branch
        %1412 = sbr.rel (%p1410) target = $region40
      $region39: #{tpu_custom_call.1} parent=5 // pred_region
        %s1413 = ssub.s32 %s12, 2
        // Predicated region
        $region41: #{tpu_custom_call.1} parent=39 // pred_check
          %p1414 = pneg %p109
        $region42: #{tpu_custom_call.1} parent=39 // pred_check_branch
          %1416 = sbr.rel (%p1414) target = $region44
        $region43: #{tpu_custom_call.1} parent=39 // pred_region
          %s1417 = sand.u32 %s94, 1
          %s1418 = scalar_lea.sflag [#allocation3], %s1417
          %s1419 = sand.u32 %s94, 1
          %s1420 = smul.addr %s1419, 2
          %s1421 = scalar_lea.vmem [#allocation2], %s1420
          %1422 = dma.done %s1418, 32
        $region44: #{tpu_custom_call.1} parent=39 // pred_fallthru
          _
      $region40: #{tpu_custom_call.1} parent=5 // pred_fallthru
        _
    $region6: #{tpu_custom_call.1} parent=1 // loop_footer
      %s16 = sadd.s32 1, %s12
    $region7: #{tpu_custom_call.1} parent=1 // loop_footer_branch
      %11 = sbr.rel target = $region3
    $region8: #{tpu_custom_call.1} parent=1 // loop_exit
      _
    %1423 = vsyncpa [#allocation3], 1
    %s1424 = scalar_lea.sflag [#allocation3], 1
    %1425 = vsyncpa %s1424, 1

</llo_original>
